<compile_context>
chip_gen: v6e
topology: v6e:2x2x1
jax: 0.10.0
libtpu: 0.0.40
codegen_flags: <defaults>
</compile_context>

<pallas_src>
import functools

import numpy as np

import jax
import jax.numpy as jnp
from jax.experimental import pallas as pl
from jax.experimental.pallas import tpu as pltpu


def _round_up(x, m):
    return ((x + m - 1) // m) * m


def _pick_query_tile(seq_len):
    # Largest tile <= 256 (multiple of 8) that divides seq_len; else one full tile.
    for cand in (256, 128, 64, 32, 16, 8):
        if seq_len % cand == 0:
            return cand
    return seq_len


def _vmem_limit_bytes():
    # Use most of physical VMEM (the review: 48 MiB leaves half of v5e/v6e idle),
    # leaving headroom for compiler-internal scratch.  Conservative fallback.
    try:
        cap = pltpu.get_tpu_info().vmem_capacity_bytes
    except Exception:
        cap = 64 * 1024 * 1024
    return int(cap * 7 // 8)


def _aft_local_kernel(q_ref, rhs_ref, colsum_ref, ewb_ref,
                      wq_ref, bq_ref, wo_ref, bo_ref,
                      *out_refs,
                      d_model, seq_len, q_tile, band_width, pad_left,
                      band_align, approx_recip):
    out_ref = out_refs[0]
    num_ref = out_refs[1] if len(out_refs) > 1 else None
    mm_dtype = rhs_ref.dtype

    # ---- band slab of rhs = concat(exp(key)*value, exp(key)), resident in VMEM ----
    if band_width == seq_len:
        start = 0                                    # dense fallback (window ~ seq_len)
    else:
        i = pl.program_id(1)
        start = jnp.clip(i * q_tile - pad_left, 0, seq_len - band_width)
        start = pl.multiple_of(start, band_align)    # provably aligned (see wrapper)
    rhs_slab = rhs_ref[0, pl.ds(start, band_width), :]           # [band, 2D]

    # ---- query projection + sigmoid gate (f32 activations; bf16 MXU operands ok) ----
    q = q_ref[0].astype(mm_dtype)                                 # [tq, D]
    query = jnp.dot(q, wq_ref[...], preferred_element_type=jnp.float32) + bq_ref[...]
    q_sig = jax.nn.sigmoid(query)                                 # [tq, D] f32

    # ---- banded AFT aggregation:
    #   ew = 1 + expm1(w_bias)*mask  =>  ew @ rhs = colsum + band(expm1) @ rhs_slab
    nd = jnp.dot(ewb_ref[0], rhs_slab, preferred_element_type=jnp.float32)
    nd = nd + colsum_ref[0]                                       # [tq, 2D] f32

    num = q_sig * nd[:, :d_model]
    den = nd[:, d_model:]
    if approx_recip:
        x = num * pl.reciprocal(den, approx=True)
    else:
        x = num / den

    out = jnp.dot(x.astype(mm_dtype), wo_ref[...],
                  preferred_element_type=jnp.float32) + bo_ref[...]
    out_ref[0] = out.astype(out_ref.dtype)
    if num_ref is not None:
        num_ref[0] = num.astype(num_ref.dtype)


def aft_local_attention(q, k, v, params, *, mm_dtype=jnp.float32,
                        emit_num=True, q_tile=None):
    """Pallas forward pass. Returns (output(x), num) like the PyTorch module
    (or just output(x) when emit_num=False)."""
    B, T, D = q.shape
    f32 = jnp.float32

    tq = q_tile if q_tile is not None else _pick_query_tile(T)
    assert T % tq == 0, "query tile must divide seq_len"
    n_q = T // tq

    # ---- hoisted per-call precompute (XLA), per the review's structural fix ----
    # (a) K/V projections + exp(key): rhs = concat(exp(key)*value, exp(key))  [B,T,2D]
    # (b) colsum = ones @ rhs (the "+1" part of the banded decomposition)     [B,1,2D]
    key = jnp.einsum("btd,de->bte", k.astype(f32), params["wk_t"]) + params["bk"]
    value = jnp.einsum("btd,de->bte", v.astype(f32), params["wv_t"]) + params["bv"]
    ek = jnp.exp(key)
    rhs_f32 = jnp.concatenate([ek * value, ek], axis=-1)
    colsum = jnp.sum(rhs_f32, axis=1, keepdims=True)
    rhs = rhs_f32.astype(mm_dtype)

    # (c) banded expm1(w_bias)*mask slabs: one [tq, band] slab per query tile.
    win = int(params["local_window_size"])
    g = 16 if tq % 16 == 0 else 8                    # sublane alignment granule
    pad_left = _round_up(max(win - 1, 0), g)
    band = _round_up(tq + pad_left + max(win - 1, 0), g)
    if band >= T:
        band, pad_left = T, 0                        # dense fallback; start == 0
    ewm1 = jnp.expm1(params["w_bias"]) * params["local_mask"]     # [T, T] f32
    starts = np.clip(np.arange(n_q) * tq - pad_left, 0, T - band)
    rows = (np.arange(n_q) * tq)[:, None, None] + np.arange(tq)[None, :, None]
    cols = starts[:, None, None] + np.arange(band)[None, None, :]
    ew_band = ewm1[rows, cols].astype(mm_dtype)                   # [n_q, tq, band]

    wq_t = params["wq_t"].astype(mm_dtype)
    wo_t = params["wo_t"].astype(mm_dtype)
    bq = params["bq"].reshape(1, D).astype(f32)
    bo = params["bo"].reshape(1, D).astype(f32)

    q_block   = pl.BlockSpec((1, tq, D), lambda b, i: (b, i, 0))
    rhs_block = pl.BlockSpec((1, T, 2 * D), lambda b, i: (b, 0, 0))   # per-batch resident
    cs_block  = pl.BlockSpec((1, 1, 2 * D), lambda b, i: (b, 0, 0))
    ewb_block = pl.BlockSpec((1, tq, band), lambda b, i: (i, 0, 0))
    w_block   = pl.BlockSpec((D, D), lambda b, i: (0, 0))
    b_block   = pl.BlockSpec((1, D), lambda b, i: (0, 0))

    out_struct = jax.ShapeDtypeStruct((B, T, D), f32)
    out_shapes = (out_struct, out_struct) if emit_num else (out_struct,)
    out_specs = [q_block, q_block] if emit_num else [q_block]

    kernel = functools.partial(
        _aft_local_kernel,
        d_model=D, seq_len=T, q_tile=tq, band_width=band, pad_left=pad_left,
        band_align=g, approx_recip=(mm_dtype == jnp.bfloat16))

    fn = pl.pallas_call(
        kernel,
        out_shape=out_shapes,
        grid_spec=pltpu.PrefetchScalarGridSpec(
            num_scalar_prefetch=0,
            grid=(B, n_q),
            in_specs=[q_block, rhs_block, cs_block, ewb_block,
                      w_block, b_block, w_block, b_block],
            out_specs=out_specs,
        ),
        compiler_params=pltpu.CompilerParams(
            # Both axes independent (no carried scratch) -> megacore can shard either
            # axis; keeps both v7x TensorCores busy even at batch size 1.
            dimension_semantics=("parallel", "parallel"),
            vmem_limit_bytes=_vmem_limit_bytes(),
        ),
    )
    res = fn(q, rhs, colsum, ew_band, wq_t, bq, wo_t, bo)
    if emit_num:
        return res[0], res[1]
    return res[0]


def get_local_mask(seq_len, local_window_size):
    # Band mask: tril(k-1) & triu(-(k-1))  <=>  |i - j| <= local_window_size - 1.
    i = jnp.arange(seq_len)[:, None]
    j = jnp.arange(seq_len)[None, :]
    w = local_window_size - 1
    mask = (j - i <= w) & (i - j <= w)
    return mask.astype(jnp.float32)


def init_params(key, d_model, seq_len, local_window_size):
    ks = jax.random.split(key, 9)
    lin_bound = 1.0 / jnp.sqrt(d_model)               # nn.Linear default-style bound
    xav_bound = jnp.sqrt(6.0 / (seq_len + seq_len))   # xavier_uniform for w_bias

    def lin(kw, kb):
        # Stored as [D_in, D_out] (already transposed vs. torch's [out, in]).
        w_t = jax.random.uniform(kw, (d_model, d_model), jnp.float32,
                                 -lin_bound, lin_bound)
        b = jax.random.uniform(kb, (d_model,), jnp.float32, -lin_bound, lin_bound)
        return w_t, b

    wq_t, bq = lin(ks[0], ks[1])
    wk_t, bk = lin(ks[2], ks[3])
    wv_t, bv = lin(ks[4], ks[5])
    wo_t, bo = lin(ks[6], ks[7])
    w_bias = jax.random.uniform(ks[8], (seq_len, seq_len), jnp.float32,
                                -xav_bound, xav_bound)
    return {
        "wq_t": wq_t, "bq": bq,
        "wk_t": wk_t, "bk": bk,
        "wv_t": wv_t, "bv": bv,
        "wo_t": wo_t, "bo": bo,
        "w_bias": w_bias,
        "local_mask": get_local_mask(seq_len, local_window_size),
        "local_window_size": local_window_size,
    }


def aft_local_reference(q, k, v, params):
    """Pure-JAX reference mirroring the PyTorch forward exactly."""
    query = q @ params["wq_t"] + params["bq"]
    key = k @ params["wk_t"] + params["bk"]
    value = v @ params["wv_t"] + params["bv"]
    w_bias = (params["w_bias"] * params["local_mask"])[None]          # [1, T, T]
    Q_ = jax.nn.sigmoid(query)
    num = jnp.exp(w_bias) @ (jnp.exp(key) * value)
    den = jnp.exp(w_bias) @ jnp.exp(key)
    num = Q_ * num
    x = num / den
    return x @ params["wo_t"] + params["bo"], num


if __name__ == "__main__":
    B, T, D = 2, 8, 32
    local_window_size = 3

    root = jax.random.PRNGKey(0)
    kq, kk, kv, kp, kq2, kk2, kv2, kp2 = jax.random.split(root, 8)
    q = jax.random.normal(kq, (B, T, D), jnp.float32)
    k = jax.random.normal(kk, (B, T, D), jnp.float32)
    v = jax.random.normal(kv, (B, T, D), jnp.float32)
    params = init_params(kp, D, T, local_window_size)

    ref_out, ref_num = aft_local_reference(q, k, v, params)

    # f32 path: must match the reference tightly.
    out, num = aft_local_attention(q, k, v, params)
    out = jax.block_until_ready(out)
    num = jax.block_until_ready(num)
    assert jnp.allclose(out, ref_out, atol=1e-4, rtol=1e-4), "output mismatch (f32)"
    assert jnp.allclose(num, ref_num, atol=1e-4, rtol=1e-4), "num mismatch (f32)"

    # bf16-operand / f32-accumulate MXU path (useful on v5e/v6e/v7x): looser check.
    out_bf, num_bf = aft_local_attention(q, k, v, params, mm_dtype=jnp.bfloat16)
    out_bf = jax.block_until_ready(out_bf)
    num_bf = jax.block_until_ready(num_bf)
    assert jnp.allclose(out_bf, ref_out, atol=5e-2, rtol=5e-2), "output mismatch (bf16)"
    assert jnp.allclose(num_bf, ref_num, atol=5e-2, rtol=5e-2), "num mismatch (bf16)"

    # Multi-tile case: exercises the banded decomposition and band-start clamping.
    T2 = 32
    q2 = jax.random.normal(kq2, (B, T2, D), jnp.float32)
    k2 = jax.random.normal(kk2, (B, T2, D), jnp.float32)
    v2 = jax.random.normal(kv2, (B, T2, D), jnp.float32)
    params2 = init_params(kp2, D, T2, local_window_size)
    ref_out2, ref_num2 = aft_local_reference(q2, k2, v2, params2)
    out2, num2 = aft_local_attention(q2, k2, v2, params2, q_tile=8)
    out2 = jax.block_until_ready(out2)
    num2 = jax.block_until_ready(num2)
    assert jnp.allclose(out2, ref_out2, atol=1e-4, rtol=1e-4), "output mismatch (band)"
    assert jnp.allclose(num2, ref_num2, atol=1e-4, rtol=1e-4), "num mismatch (band)"

    # num-free variant (skips the extra HBM writeback when num is unused downstream).
    out_only = aft_local_attention(q, k, v, params, emit_num=False)
    out_only = jax.block_until_ready(out_only)
    assert jnp.allclose(out_only, ref_out, atol=1e-4, rtol=1e-4), "output mismatch (no num)"

    print("KERNEL_OK")
</pallas_src>

<mosaic_0001>
module attributes {stable_mosaic.version = 11 : i64} {
  func.func @_aft_local_kernel(%arg0: i32, %arg1: i32, %arg2: memref<1x8x32xf32, #tpu.memory_space<vmem>>, %arg3: memref<1x8x64xf32, #tpu.memory_space<vmem>>, %arg4: memref<1x1x64xf32, #tpu.memory_space<vmem>>, %arg5: memref<1x8x8xf32, #tpu.memory_space<vmem>>, %arg6: memref<32x32xf32, #tpu.memory_space<vmem>>, %arg7: memref<1x32xf32, #tpu.memory_space<vmem>>, %arg8: memref<32x32xf32, #tpu.memory_space<vmem>>, %arg9: memref<1x32xf32, #tpu.memory_space<vmem>>, %arg10: memref<1x8x32xf32, #tpu.memory_space<vmem>>, %arg11: memref<1x8x32xf32, #tpu.memory_space<vmem>>) attributes {dimension_semantics = [#tpu.dimension_semantics<parallel>, #tpu.dimension_semantics<parallel>], iteration_bounds = array<i64: 2, 1>, scalar_prefetch = 0 : i64, scratch_operands = 0 : i64, tpu.core_type = #tpu.core_type<tc>, window_params = [{transform_indices = @transform_0, window_bounds = array<i64: 1, 8, 32>}, {transform_indices = @transform_1, window_bounds = array<i64: 1, 8, 64>}, {transform_indices = @transform_2, window_bounds = array<i64: 1, 1, 64>}, {transform_indices = @transform_3, window_bounds = array<i64: 1, 8, 8>}, {pipeline_mode = #tpu.pipeline_mode<synchronous>, transform_indices = @transform_4, window_bounds = array<i64: 32, 32>}, {pipeline_mode = #tpu.pipeline_mode<synchronous>, transform_indices = @transform_5, window_bounds = array<i64: 1, 32>}, {pipeline_mode = #tpu.pipeline_mode<synchronous>, transform_indices = @transform_6, window_bounds = array<i64: 32, 32>}, {pipeline_mode = #tpu.pipeline_mode<synchronous>, transform_indices = @transform_7, window_bounds = array<i64: 1, 32>}, {transform_indices = @transform_8, window_bounds = array<i64: 1, 8, 32>}, {transform_indices = @transform_9, window_bounds = array<i64: 1, 8, 32>}]} {
    %c0 = arith.constant 0 : index
    %c0_0 = arith.constant 0 : index
    %c0_1 = arith.constant 0 : index
    %0 = vector.load %arg3[%c0, %c0_0, %c0_1] : memref<1x8x64xf32, #tpu.memory_space<vmem>>, vector<1x8x64xf32>
    %1 = vector.shape_cast %0 : vector<1x8x64xf32> to vector<8x64xf32>
    %c0_2 = arith.constant 0 : index
    %c0_3 = arith.constant 0 : index
    %c0_4 = arith.constant 0 : index
    %2 = vector.load %arg2[%c0_2, %c0_3, %c0_4] : memref<1x8x32xf32, #tpu.memory_space<vmem>>, vector<1x8x32xf32>
    %3 = vector.shape_cast %2 : vector<1x8x32xf32> to vector<8x32xf32>
    %c0_5 = arith.constant 0 : index
    %c0_6 = arith.constant 0 : index
    %4 = vector.load %arg6[%c0_5, %c0_6] : memref<32x32xf32, #tpu.memory_space<vmem>>, vector<32x32xf32>
    %cst = arith.constant dense<0.000000e+00> : vector<8x32xf32>
    %5 = tpu.matmul %3, %4, %cst {dimension_numbers = #tpu.dot_dimension_numbers<[1], [0], [0], [1], [0, 0, 1, 1], [], []>} : vector<8x32xf32>, vector<32x32xf32>, vector<8x32xf32> -> vector<8x32xf32>
    %c0_7 = arith.constant 0 : index
    %c0_8 = arith.constant 0 : index
    %6 = vector.load %arg7[%c0_7, %c0_8] : memref<1x32xf32, #tpu.memory_space<vmem>>, vector<1x32xf32>
    %7 = vector.broadcast %6 : vector<1x32xf32> to vector<8x32xf32>
    %8 = arith.addf %5, %7 : vector<8x32xf32>
    %9 = arith.negf %8 : vector<8x32xf32>
    %10 = math.exp %9 : vector<8x32xf32>
    %cst_9 = arith.constant 1.000000e+00 : f32
    %11 = vector.broadcast %cst_9 : f32 to vector<8x32xf32>
    %12 = arith.addf %11, %10 : vector<8x32xf32>
    %13 = arith.divf %11, %12 : vector<8x32xf32>
    %c0_10 = arith.constant 0 : index
    %c0_11 = arith.constant 0 : index
    %c0_12 = arith.constant 0 : index
    %14 = vector.load %arg5[%c0_10, %c0_11, %c0_12] : memref<1x8x8xf32, #tpu.memory_space<vmem>>, vector<1x8x8xf32>
    %15 = vector.shape_cast %14 : vector<1x8x8xf32> to vector<8x8xf32>
    %cst_13 = arith.constant dense<0.000000e+00> : vector<8x64xf32>
    %16 = tpu.matmul %15, %1, %cst_13 {dimension_numbers = #tpu.dot_dimension_numbers<[1], [0], [0], [1], [0, 0, 1, 1], [], []>} : vector<8x8xf32>, vector<8x64xf32>, vector<8x64xf32> -> vector<8x64xf32>
    %c0_14 = arith.constant 0 : index
    %c0_15 = arith.constant 0 : index
    %c0_16 = arith.constant 0 : index
    %17 = vector.load %arg4[%c0_14, %c0_15, %c0_16] : memref<1x1x64xf32, #tpu.memory_space<vmem>>, vector<1x1x64xf32>
    %18 = vector.shape_cast %17 : vector<1x1x64xf32> to vector<1x64xf32>
    %19 = vector.broadcast %18 : vector<1x64xf32> to vector<8x64xf32>
    %20 = arith.addf %16, %19 : vector<8x64xf32>
    %21 = vector.extract_strided_slice %20 {offsets = [0, 0], sizes = [8, 32], strides = [1, 1]} : vector<8x64xf32> to vector<8x32xf32>
    %22 = arith.mulf %13, %21 : vector<8x32xf32>
    %23 = vector.extract_strided_slice %20 {offsets = [0, 32], sizes = [8, 32], strides = [1, 1]} : vector<8x64xf32> to vector<8x32xf32>
    %24 = arith.divf %22, %23 : vector<8x32xf32>
    %c0_17 = arith.constant 0 : index
    %c0_18 = arith.constant 0 : index
    %25 = vector.load %arg8[%c0_17, %c0_18] : memref<32x32xf32, #tpu.memory_space<vmem>>, vector<32x32xf32>
    %cst_19 = arith.constant dense<0.000000e+00> : vector<8x32xf32>
    %26 = tpu.matmul %24, %25, %cst_19 {dimension_numbers = #tpu.dot_dimension_numbers<[1], [0], [0], [1], [0, 0, 1, 1], [], []>} : vector<8x32xf32>, vector<32x32xf32>, vector<8x32xf32> -> vector<8x32xf32>
    %c0_20 = arith.constant 0 : index
    %c0_21 = arith.constant 0 : index
    %27 = vector.load %arg9[%c0_20, %c0_21] : memref<1x32xf32, #tpu.memory_space<vmem>>, vector<1x32xf32>
    %28 = vector.broadcast %27 : vector<1x32xf32> to vector<8x32xf32>
    %29 = arith.addf %26, %28 : vector<8x32xf32>
    %c0_22 = arith.constant 0 : index
    %c0_23 = arith.constant 0 : index
    %c0_24 = arith.constant 0 : index
    %30 = vector.load %arg10[%c0_22, %c0_23, %c0_24] : memref<1x8x32xf32, #tpu.memory_space<vmem>>, vector<1x8x32xf32>
    %31 = vector.shape_cast %30 : vector<1x8x32xf32> to vector<8x32xf32>
    %32 = vector.shape_cast %29 : vector<8x32xf32> to vector<1x8x32xf32>
    tpu.vector_store %arg10[%c0_22, %c0_23, %c0_24], %32 {strides = array<i32>} : memref<1x8x32xf32, #tpu.memory_space<vmem>>, vector<1x8x32xf32>,
    %c0_25 = arith.constant 0 : index
    %c0_26 = arith.constant 0 : index
    %c0_27 = arith.constant 0 : index
    %33 = vector.load %arg11[%c0_25, %c0_26, %c0_27] : memref<1x8x32xf32, #tpu.memory_space<vmem>>, vector<1x8x32xf32>
    %34 = vector.shape_cast %33 : vector<1x8x32xf32> to vector<8x32xf32>
    %35 = vector.shape_cast %22 : vector<8x32xf32> to vector<1x8x32xf32>
    tpu.vector_store %arg11[%c0_25, %c0_26, %c0_27], %35 {strides = array<i32>} : memref<1x8x32xf32, #tpu.memory_space<vmem>>, vector<1x8x32xf32>,
    return
  }
  func.func @transform_0(%arg0: i32, %arg1: i32) -> (i32, i32, i32) {
    %c0_i32 = arith.constant 0 : i32
    %c0_i32_0 = arith.constant 0 : i32
    return %arg0, %arg1, %c0_i32 : i32, i32, i32
  }
  func.func @transform_1(%arg0: i32, %arg1: i32) -> (i32, i32, i32) {
    %c0_i32 = arith.constant 0 : i32
    %c0_i32_0 = arith.constant 0 : i32
    %c0_i32_1 = arith.constant 0 : i32
    return %arg0, %c0_i32, %c0_i32_0 : i32, i32, i32
  }
  func.func @transform_2(%arg0: i32, %arg1: i32) -> (i32, i32, i32) {
    %c0_i32 = arith.constant 0 : i32
    %c0_i32_0 = arith.constant 0 : i32
    %c0_i32_1 = arith.constant 0 : i32
    return %arg0, %c0_i32, %c0_i32_0 : i32, i32, i32
  }
  func.func @transform_3(%arg0: i32, %arg1: i32) -> (i32, i32, i32) {
    %c0_i32 = arith.constant 0 : i32
    %c0_i32_0 = arith.constant 0 : i32
    %c0_i32_1 = arith.constant 0 : i32
    return %arg1, %c0_i32, %c0_i32_0 : i32, i32, i32
  }
  func.func @transform_4(%arg0: i32, %arg1: i32) -> (i32, i32) {
    %c0_i32 = arith.constant 0 : i32
    %c0_i32_0 = arith.constant 0 : i32
    %c0_i32_1 = arith.constant 0 : i32
    return %c0_i32, %c0_i32_0 : i32, i32
  }
  func.func @transform_5(%arg0: i32, %arg1: i32) -> (i32, i32) {
    %c0_i32 = arith.constant 0 : i32
    %c0_i32_0 = arith.constant 0 : i32
    %c0_i32_1 = arith.constant 0 : i32
    return %c0_i32, %c0_i32_0 : i32, i32
  }
  func.func @transform_6(%arg0: i32, %arg1: i32) -> (i32, i32) {
    %c0_i32 = arith.constant 0 : i32
    %c0_i32_0 = arith.constant 0 : i32
    %c0_i32_1 = arith.constant 0 : i32
    return %c0_i32, %c0_i32_0 : i32, i32
  }
  func.func @transform_7(%arg0: i32, %arg1: i32) -> (i32, i32) {
    %c0_i32 = arith.constant 0 : i32
    %c0_i32_0 = arith.constant 0 : i32
    %c0_i32_1 = arith.constant 0 : i32
    return %c0_i32, %c0_i32_0 : i32, i32
  }
  func.func @transform_8(%arg0: i32, %arg1: i32) -> (i32, i32, i32) {
    %c0_i32 = arith.constant 0 : i32
    %c0_i32_0 = arith.constant 0 : i32
    return %arg0, %arg1, %c0_i32 : i32, i32, i32
  }
  func.func @transform_9(%arg0: i32, %arg1: i32) -> (i32, i32, i32) {
    %c0_i32 = arith.constant 0 : i32
    %c0_i32_0 = arith.constant 0 : i32
    return %arg0, %arg1, %c0_i32 : i32, i32, i32
  }
}

</mosaic_0001>

<llo_original>
// kernel: tpu_custom_call.1
$region0: #{tpu_custom_call.1}
  #allocation0 [shape = 'u32[]', space=smem, size = 0x4, offset = 0x4, fixed_abs, tag = 'smem constant byte address 0x4 - core index']
  #allocation1 [shape = 'u32[144,128]{1,0:T(1,128)}', space=vmem, size = 0x12000, scoped, tag = 'internal scratch']
  %s0 = inlined_call_operand.hbm [shape: f32[2,8,32], index: 0, kind: input, shape index: {}]
  %s1 = inlined_call_operand.hbm [shape: f32[2,8,64], index: 1, kind: input, shape index: {}]
  %s2 = inlined_call_operand.vmem [shape: f32[2,1,64], index: 2, kind: input, shape index: {}]
  %s3 = inlined_call_operand.hbm [shape: f32[1,8,8], index: 3, kind: input, shape index: {}]
  %s4 = inlined_call_operand.hbm [shape: f32[32,32], index: 4, kind: input, shape index: {}]
  %s5 = inlined_call_operand.vmem [shape: f32[1,32], index: 5, kind: input, shape index: {}]
  %s6 = inlined_call_operand.hbm [shape: f32[32,32], index: 6, kind: input, shape index: {}]
  %s7 = inlined_call_operand.vmem [shape: f32[1,32], index: 7, kind: input, shape index: {}]
  %s8 = inlined_call_operand.hbm [shape: f32[2,8,32], index: 8, kind: output, shape index: {0}]
  %s9 = inlined_call_operand.hbm [shape: f32[2,8,32], index: 9, kind: output, shape index: {1}]
  %10 = xla_tuple %s8, %s9
  %s11 = sld [smem:[#allocation0]]
  $region93: #{tpu_custom_call.1} parent=0
    _
  %s13 = ssub.s32 1, %s11
  %s14 = scalar_select 0, %s13, %s11
  $region1: #{tpu_custom_call.1} parent=0
    #allocation2 [shape = 'u8[8192]{0}', space=vmem, size = 0x2000, scoped, tag = 'input window, operand 0']
    #allocation3 [shape = 's32[2]{0}', space=sflag, size = 0x8, scoped, tag = 'scoped memory for tpu_custom_call.1']
    #allocation4 [shape = 's32[2]{0}', space=sflag, size = 0x8, scoped, tag = 'scoped memory for tpu_custom_call.1']
    #allocation5 [shape = 'u8[8192]{0}', space=vmem, size = 0x2000, scoped, tag = 'input window, operand 1']
    #allocation6 [shape = 's32[2]{0}', space=sflag, size = 0x8, scoped, tag = 'scoped memory for tpu_custom_call.1']
    #allocation7 [shape = 'u8[4096]{0}', space=vmem, size = 0x1000, scoped, tag = 'input window, operand 3, single buffered']
    #allocation8 [shape = 'u8[16384]{0}', space=vmem, size = 0x4000, scoped, tag = 'input window, operand 4, single buffered']
    #allocation9 [shape = 's32[1]{0}', space=sflag, size = 0x4, scoped, tag = 'scoped memory for tpu_custom_call.1']
    #allocation10 [shape = 'u8[16384]{0}', space=vmem, size = 0x4000, scoped, tag = 'input window, operand 6, single buffered']
    #allocation11 [shape = 'u8[8192]{0}', space=vmem, size = 0x2000, scoped, tag = 'output window, operand 0']
    #allocation12 [shape = 'u8[8192]{0}', space=vmem, size = 0x2000, scoped, tag = 'output window, operand 1']
    #allocation13 [shape = 's32[2]{0}', space=sflag, size = 0x8, scoped, tag = 'scoped memory for tpu_custom_call.1']
    %15 = vsyncpa [#allocation3], 0
    %s16 = scalar_lea.sflag [#allocation3], 1
    %17 = vsyncpa %s16, 0
    %18 = vsyncpa [#allocation6], 0
    %s19 = scalar_lea.sflag [#allocation6], 1
    %20 = vsyncpa %s19, 0
    %21 = vsyncpa [#allocation9], 0
    %22 = vsyncpa [#allocation4], 0
    %s23 = scalar_lea.sflag [#allocation4], 1
    %24 = vsyncpa %s23, 0
    %25 = vsyncpa [#allocation13], 0
    %s26 = scalar_lea.sflag [#allocation13], 1
    %27 = vsyncpa %s26, 0
    loop: start=0, step=1, limit=4
    $region2: #{tpu_custom_call.1} parent=1 // loop_pre_header
      _
    $region3: #{tpu_custom_call.1} parent=1 // loop_header
      %s29 = sphi 0, %s33
      %p30 = scmp.ge.s32.totalorder %s29, 4
      %s36 = sphi 0, %s48
      %s37 = sphi 0, %s44
      %s38 = sphi 0, %s36
      %s39 = sphi 0, %s37
      %s40 = sphi 0, %s38
      %s41 = sphi 0, %s39
      %s53 = sphi 0, %s55
      %s56 = sphi 0, %s53
      %s57 = sphi 0, %s56
      %s73 = sphi 0, %s57
      %s79 = sphi 0, %s81
      %s82 = sphi 0, %s79
      %s83 = sphi 0, %s82
      %s99 = sphi 0, %s83
      %s105 = sphi 0, %s107
      %s108 = sphi 0, %s105
      %s109 = sphi 0, %s108
      %s125 = sphi 0, %s109
      %s131 = sphi 0, %s133
      %s134 = sphi 0, %s131
      %s135 = sphi 0, %s134
      %s151 = sphi 0, %s135
      %s155 = sphi 0, %s155
      %s157 = sphi 0, %s155
      %s158 = sphi 0, %s157
      %s172 = sphi 0, %s158
      %s176 = sphi 0, %s176
      %s178 = sphi 0, %s176
      %s179 = sphi 0, %s178
      %s193 = sphi 0, %s179
      %s197 = sphi 0, %s197
      %s199 = sphi 0, %s197
      %s200 = sphi 0, %s199
      %s214 = sphi 0, %s200
      %s218 = sphi 0, %s218
      %s220 = sphi 0, %s218
      %s221 = sphi 0, %s220
      %s235 = sphi 0, %s221
      %s243 = sphi 0, %s245
      %s246 = sphi 0, %s243
      %s247 = sphi 0, %s246
      %s263 = sphi 0, %s247
      %s271 = sphi 0, %s273
      %s274 = sphi 0, %s271
      %s275 = sphi 0, %s274
      %s291 = sphi 0, %s275
    $region4: #{tpu_custom_call.1} parent=1 // loop_header_branch
      %32 = sbr.rel (%p30) target = $region8
    $region5: #{tpu_custom_call.1} parent=1 // loop_body
      %s34 = ssub.s32 %s29, 1
      %s35 = ssub.s32 %s29, 2
      %s42 = sadd.s32 1, %s37
      %p43 = scmp.ge.s32.totalorder %s42, 1
      %s44 = scalar_select %p43, 0, %s42
      %s45 = sadd.s32 1, %s36
      %s46 = scalar_select %p43, %s45, %s36
      %p47 = scmp.ge.s32.totalorder %s46, 2
      %s48 = scalar_select %p47, 0, %s46
      %s49 = ssub.s32 %s36, %s48
      %s50 = ssub.s32 %s37, %s44
      %s51 = sor.u32 %s49, %s50
      %p52 = scmp.eq.s32.totalorder %s51, 0
      %s54 = sadd.s32 %s53, 1
      %s55 = scalar_select %p52, %s53, %s54
      %p58 = pneg %p52
      %p59 = scmp.eq.s32.totalorder %s29, 1
      %p60 = por %p58, %p59
      %p61 = scmp.ne.s32.totalorder %s53, %s56
      %p62 = scmp.eq.s32.totalorder %s29, 0
      %p63 = por %p61, %p62
      %p64 = scmp.ne.s32.totalorder %s53, %s56
      %p65 = scmp.eq.s32.totalorder %s34, 1
      %p66 = por %p64, %p65
      %p67 = scmp.ne.s32.totalorder %s56, %s57
      %p68 = scmp.eq.s32.totalorder %s34, 0
      %p69 = por %p67, %p68
      %p70 = scmp.ne.s32.totalorder %s56, %s57
      %p71 = scmp.eq.s32.totalorder %s35, 1
      %p72 = por %p70, %p71
      %p74 = scmp.ne.s32.totalorder %s57, %s73
      %p75 = scmp.eq.s32.totalorder %s35, 0
      %p76 = por %p74, %p75
      %s77 = ssub.s32 %s36, %s48
      %p78 = scmp.eq.s32.totalorder %s77, 0
      %s80 = sadd.s32 %s79, 1
      %s81 = scalar_select %p78, %s79, %s80
      %p84 = pneg %p78
      %p85 = scmp.eq.s32.totalorder %s29, 1
      %p86 = por %p84, %p85
      %p87 = scmp.ne.s32.totalorder %s79, %s82
      %p88 = scmp.eq.s32.totalorder %s29, 0
      %p89 = por %p87, %p88
      %p90 = scmp.ne.s32.totalorder %s79, %s82
      %p91 = scmp.eq.s32.totalorder %s34, 1
      %p92 = por %p90, %p91
      %p93 = scmp.ne.s32.totalorder %s82, %s83
      %p94 = scmp.eq.s32.totalorder %s34, 0
      %p95 = por %p93, %p94
      %p96 = scmp.ne.s32.totalorder %s82, %s83
      %p97 = scmp.eq.s32.totalorder %s35, 1
      %p98 = por %p96, %p97
      %p100 = scmp.ne.s32.totalorder %s83, %s99
      %p101 = scmp.eq.s32.totalorder %s35, 0
      %p102 = por %p100, %p101
      %s103 = ssub.s32 %s36, %s48
      %p104 = scmp.eq.s32.totalorder %s103, 0
      %s106 = sadd.s32 %s105, 1
      %s107 = scalar_select %p104, %s105, %s106
      %p110 = pneg %p104
      %p111 = scmp.eq.s32.totalorder %s29, 1
      %p112 = por %p110, %p111
      %p113 = scmp.ne.s32.totalorder %s105, %s108
      %p114 = scmp.eq.s32.totalorder %s29, 0
      %p115 = por %p113, %p114
      %p116 = scmp.ne.s32.totalorder %s105, %s108
      %p117 = scmp.eq.s32.totalorder %s34, 1
      %p118 = por %p116, %p117
      %p119 = scmp.ne.s32.totalorder %s108, %s109
      %p120 = scmp.eq.s32.totalorder %s34, 0
      %p121 = por %p119, %p120
      %p122 = scmp.ne.s32.totalorder %s108, %s109
      %p123 = scmp.eq.s32.totalorder %s35, 1
      %p124 = por %p122, %p123
      %p126 = scmp.ne.s32.totalorder %s109, %s125
      %p127 = scmp.eq.s32.totalorder %s35, 0
      %p128 = por %p126, %p127
      %s129 = ssub.s32 %s37, %s44
      %p130 = scmp.eq.s32.totalorder %s129, 0
      %s132 = sadd.s32 %s131, 1
      %s133 = scalar_select %p130, %s131, %s132
      %p136 = pneg %p130
      %p137 = scmp.eq.s32.totalorder %s29, 1
      %p138 = por %p136, %p137
      %p139 = scmp.ne.s32.totalorder %s131, %s134
      %p140 = scmp.eq.s32.totalorder %s29, 0
      %p141 = por %p139, %p140
      %p142 = scmp.ne.s32.totalorder %s131, %s134
      %p143 = scmp.eq.s32.totalorder %s34, 1
      %p144 = por %p142, %p143
      %p145 = scmp.ne.s32.totalorder %s134, %s135
      %p146 = scmp.eq.s32.totalorder %s34, 0
      %p147 = por %p145, %p146
      %p148 = scmp.ne.s32.totalorder %s134, %s135
      %p149 = scmp.eq.s32.totalorder %s35, 1
      %p150 = por %p148, %p149
      %p152 = scmp.ne.s32.totalorder %s135, %s151
      %p153 = scmp.eq.s32.totalorder %s35, 0
      %p154 = por %p152, %p153
      %s156 = sadd.s32 %s155, 1
      %p159 = scmp.eq.s32.totalorder %s29, 1
      %p160 = scmp.ne.s32.totalorder %s155, %s157
      %p161 = scmp.eq.s32.totalorder %s29, 0
      %p162 = por %p160, %p161
      %p163 = scmp.ne.s32.totalorder %s155, %s157
      %p164 = scmp.eq.s32.totalorder %s34, 1
      %p165 = por %p163, %p164
      %p166 = scmp.ne.s32.totalorder %s157, %s158
      %p167 = scmp.eq.s32.totalorder %s34, 0
      %p168 = por %p166, %p167
      %p169 = scmp.ne.s32.totalorder %s157, %s158
      %p170 = scmp.eq.s32.totalorder %s35, 1
      %p171 = por %p169, %p170
      %p173 = scmp.ne.s32.totalorder %s158, %s172
      %p174 = scmp.eq.s32.totalorder %s35, 0
      %p175 = por %p173, %p174
      %s177 = sadd.s32 %s176, 1
      %p180 = scmp.eq.s32.totalorder %s29, 1
      %p181 = scmp.ne.s32.totalorder %s176, %s178
      %p182 = scmp.eq.s32.totalorder %s29, 0
      %p183 = por %p181, %p182
      %p184 = scmp.ne.s32.totalorder %s176, %s178
      %p185 = scmp.eq.s32.totalorder %s34, 1
      %p186 = por %p184, %p185
      %p187 = scmp.ne.s32.totalorder %s178, %s179
      %p188 = scmp.eq.s32.totalorder %s34, 0
      %p189 = por %p187, %p188
      %p190 = scmp.ne.s32.totalorder %s178, %s179
      %p191 = scmp.eq.s32.totalorder %s35, 1
      %p192 = por %p190, %p191
      %p194 = scmp.ne.s32.totalorder %s179, %s193
      %p195 = scmp.eq.s32.totalorder %s35, 0
      %p196 = por %p194, %p195
      %s198 = sadd.s32 %s197, 1
      %p201 = scmp.eq.s32.totalorder %s29, 1
      %p202 = scmp.ne.s32.totalorder %s197, %s199
      %p203 = scmp.eq.s32.totalorder %s29, 0
      %p204 = por %p202, %p203
      %p205 = scmp.ne.s32.totalorder %s197, %s199
      %p206 = scmp.eq.s32.totalorder %s34, 1
      %p207 = por %p205, %p206
      %p208 = scmp.ne.s32.totalorder %s199, %s200
      %p209 = scmp.eq.s32.totalorder %s34, 0
      %p210 = por %p208, %p209
      %p211 = scmp.ne.s32.totalorder %s199, %s200
      %p212 = scmp.eq.s32.totalorder %s35, 1
      %p213 = por %p211, %p212
      %p215 = scmp.ne.s32.totalorder %s200, %s214
      %p216 = scmp.eq.s32.totalorder %s35, 0
      %p217 = por %p215, %p216
      %s219 = sadd.s32 %s218, 1
      %p222 = scmp.eq.s32.totalorder %s29, 1
      %p223 = scmp.ne.s32.totalorder %s218, %s220
      %p224 = scmp.eq.s32.totalorder %s29, 0
      %p225 = por %p223, %p224
      %p226 = scmp.ne.s32.totalorder %s218, %s220
      %p227 = scmp.eq.s32.totalorder %s34, 1
      %p228 = por %p226, %p227
      %p229 = scmp.ne.s32.totalorder %s220, %s221
      %p230 = scmp.eq.s32.totalorder %s34, 0
      %p231 = por %p229, %p230
      %p232 = scmp.ne.s32.totalorder %s220, %s221
      %p233 = scmp.eq.s32.totalorder %s35, 1
      %p234 = por %p232, %p233
      %p236 = scmp.ne.s32.totalorder %s221, %s235
      %p237 = scmp.eq.s32.totalorder %s35, 0
      %p238 = por %p236, %p237
      %s239 = ssub.s32 %s36, %s48
      %s240 = ssub.s32 %s37, %s44
      %s241 = sor.u32 %s239, %s240
      %p242 = scmp.eq.s32.totalorder %s241, 0
      %s244 = sadd.s32 %s243, 1
      %s245 = scalar_select %p242, %s243, %s244
      %p248 = pneg %p242
      %p249 = scmp.eq.s32.totalorder %s29, 1
      %p250 = por %p248, %p249
      %p251 = scmp.ne.s32.totalorder %s243, %s246
      %p252 = scmp.eq.s32.totalorder %s29, 0
      %p253 = por %p251, %p252
      %p254 = scmp.ne.s32.totalorder %s243, %s246
      %p255 = scmp.eq.s32.totalorder %s34, 1
      %p256 = por %p254, %p255
      %p257 = scmp.ne.s32.totalorder %s246, %s247
      %p258 = scmp.eq.s32.totalorder %s34, 0
      %p259 = por %p257, %p258
      %p260 = scmp.ne.s32.totalorder %s246, %s247
      %p261 = scmp.eq.s32.totalorder %s35, 1
      %p262 = por %p260, %p261
      %p264 = scmp.ne.s32.totalorder %s247, %s263
      %p265 = scmp.eq.s32.totalorder %s35, 0
      %p266 = por %p264, %p265
      %s267 = ssub.s32 %s36, %s48
      %s268 = ssub.s32 %s37, %s44
      %s269 = sor.u32 %s267, %s268
      %p270 = scmp.eq.s32.totalorder %s269, 0
      %s272 = sadd.s32 %s271, 1
      %s273 = scalar_select %p270, %s271, %s272
      %p276 = pneg %p270
      %p277 = scmp.eq.s32.totalorder %s29, 1
      %p278 = por %p276, %p277
      %p279 = scmp.ne.s32.totalorder %s271, %s274
      %p280 = scmp.eq.s32.totalorder %s29, 0
      %p281 = por %p279, %p280
      %p282 = scmp.ne.s32.totalorder %s271, %s274
      %p283 = scmp.eq.s32.totalorder %s34, 1
      %p284 = por %p282, %p283
      %p285 = scmp.ne.s32.totalorder %s274, %s275
      %p286 = scmp.eq.s32.totalorder %s34, 0
      %p287 = por %p285, %p286
      %p288 = scmp.ne.s32.totalorder %s274, %s275
      %p289 = scmp.eq.s32.totalorder %s35, 1
      %p290 = por %p288, %p289
      %p292 = scmp.ne.s32.totalorder %s275, %s291
      %p293 = scmp.eq.s32.totalorder %s35, 0
      %p294 = por %p292, %p293
      %p295 = scmp.le.s32.totalorder 1, %s29
      %p296 = scmp.lt.s32.totalorder %s29, 3
      %p297 = pnand %p295, %p296
      %p298 = pneg %p297
      // Predicated region
      $region9: #{tpu_custom_call.1} parent=5 // pred_check
        _
      $region10: #{tpu_custom_call.1} parent=5 // pred_check_branch
        %300 = sbr.rel (%p297) target = $region12
      $region11: #{tpu_custom_call.1} parent=5 // pred_region
        %s301 = ssub.s32 %s29, 1
        // Predicated region
        $region13: #{tpu_custom_call.1} parent=11 // pred_check
          %p302 = pneg %p147
        $region14: #{tpu_custom_call.1} parent=11 // pred_check_branch
          %304 = sbr.rel (%p302) target = $region16
        $region15: #{tpu_custom_call.1} parent=11 // pred_region
          %s306 = ssub.s32 128, 128
          %307 = vsyncadd [#allocation6], %s306
          %s308 = smul.addr %s39, 128
          %s309 = scalar_lea.hbm %s3, %s308
          %s311 = sshll.u32 [#allocation7], 4
          %s312 = int_to_ptr.vmem [resolvable:$true] %s311
          %314 = dma.hbm_to_vmem [thread:$0]  %s309, 128, %s312, [#allocation6]
        $region16: #{tpu_custom_call.1} parent=11 // pred_fallthru
          _
        // Predicated region
        $region17: #{tpu_custom_call.1} parent=11 // pred_check
          %p315 = pneg %p168
        $region18: #{tpu_custom_call.1} parent=11 // pred_check_branch
          %317 = sbr.rel (%p315) target = $region20
        $region19: #{tpu_custom_call.1} parent=11 // pred_region
          %s319 = ssub.s32 512, 512
          %320 = vsyncadd [#allocation9], %s319
          %s321 = sshll.u32 [#allocation8], 4
          %s322 = int_to_ptr.vmem [resolvable:$true] %s321
          %327 = dma.hbm_to_vmem [thread:$0]  %s4, 512, %s322, [#allocation9], 128, 128, 8
        $region20: #{tpu_custom_call.1} parent=11 // pred_fallthru
          _
        // Predicated region
        $region21: #{tpu_custom_call.1} parent=11 // pred_check
          %p328 = pneg %p189
        $region22: #{tpu_custom_call.1} parent=11 // pred_check_branch
          %330 = sbr.rel (%p328) target = $region24
        $region23: #{tpu_custom_call.1} parent=11 // pred_region
          _
        $region24: #{tpu_custom_call.1} parent=11 // pred_fallthru
          _
        // Predicated region
        $region25: #{tpu_custom_call.1} parent=11 // pred_check
          %p331 = pneg %p210
        $region26: #{tpu_custom_call.1} parent=11 // pred_check_branch
          %333 = sbr.rel (%p331) target = $region28
        $region27: #{tpu_custom_call.1} parent=11 // pred_region
          %s335 = ssub.s32 512, 512
          %336 = vsyncadd [#allocation9], %s335
          %s337 = sshll.u32 [#allocation10], 4
          %s338 = int_to_ptr.vmem [resolvable:$true] %s337
          %343 = dma.hbm_to_vmem [thread:$0]  %s6, 512, %s338, [#allocation9], 128, 128, 8
        $region28: #{tpu_custom_call.1} parent=11 // pred_fallthru
          _
        // Predicated region
        $region29: #{tpu_custom_call.1} parent=11 // pred_check
          %p344 = pneg %p231
        $region30: #{tpu_custom_call.1} parent=11 // pred_check_branch
          %346 = sbr.rel (%p344) target = $region32
        $region31: #{tpu_custom_call.1} parent=11 // pred_region
          _
        $region32: #{tpu_custom_call.1} parent=11 // pred_fallthru
          _
      $region12: #{tpu_custom_call.1} parent=5 // pred_fallthru
        _
      %p347 = scmp.lt.s32.totalorder %s29, 2
      // Predicated region
      $region33: #{tpu_custom_call.1} parent=5 // pred_check
        %p348 = pneg %p347
      $region34: #{tpu_custom_call.1} parent=5 // pred_check_branch
        %350 = sbr.rel (%p348) target = $region36
      $region35: #{tpu_custom_call.1} parent=5 // pred_region
        // Predicated region
        $region37: #{tpu_custom_call.1} parent=35 // pred_check
          %p351 = pneg %p63
        $region38: #{tpu_custom_call.1} parent=35 // pred_check_branch
          %353 = sbr.rel (%p351) target = $region40
        $region39: #{tpu_custom_call.1} parent=35 // pred_region
          %s354 = sand.u32 %s53, 1
          %s355 = scalar_lea.sflag [#allocation3], %s354
          %s356 = sand.u32 %s53, 1
          %s357 = smul.addr %s356, 8
          %s358 = scalar_lea.vmem [#allocation2], %s357
          %s360 = ssub.s32 128, 128
          %361 = vsyncadd %s355, %s360
          %s362 = sadd.s32 %s37, %s36
          %s363 = smul.addr %s362, 128
          %s364 = scalar_lea.hbm %s0, %s363
          %s366 = sshll.u32 %s358, 4
          %s367 = int_to_ptr.vmem [resolvable:$true] %s366
          %369 = dma.hbm_to_vmem [thread:$0]  %s364, 128, %s367, %s355
        $region40: #{tpu_custom_call.1} parent=35 // pred_fallthru
          _
        // Predicated region
        $region41: #{tpu_custom_call.1} parent=35 // pred_check
          %p370 = pneg %p89
        $region42: #{tpu_custom_call.1} parent=35 // pred_check_branch
          %372 = sbr.rel (%p370) target = $region44
        $region43: #{tpu_custom_call.1} parent=35 // pred_region
          %s373 = sand.u32 %s29, 1
          %s374 = scalar_lea.sflag [#allocation6], %s373
          %s375 = sand.u32 %s79, 1
          %s376 = smul.addr %s375, 8
          %s377 = scalar_lea.vmem [#allocation5], %s376
          %s379 = ssub.s32 128, 128
          %380 = vsyncadd %s374, %s379
          %s381 = smul.addr %s36, 128
          %s382 = scalar_lea.hbm %s1, %s381
          %s384 = sshll.u32 %s377, 4
          %s385 = int_to_ptr.vmem [resolvable:$true] %s384
          %387 = dma.hbm_to_vmem [thread:$0]  %s382, 128, %s385, %s374
        $region44: #{tpu_custom_call.1} parent=35 // pred_fallthru
          _
        // Predicated region
        $region45: #{tpu_custom_call.1} parent=35 // pred_check
          %p388 = pneg %p115
        $region46: #{tpu_custom_call.1} parent=35 // pred_check_branch
          %390 = sbr.rel (%p388) target = $region48
        $region47: #{tpu_custom_call.1} parent=35 // pred_region
          %p391 = scmp.lt.s32.totalorder %s36, 1
          %s392 = scalar_select %p391, %s36, 1
          %s393 = scalar_lea.vmem %s2, %s392
        $region48: #{tpu_custom_call.1} parent=35 // pred_fallthru
          _
      $region36: #{tpu_custom_call.1} parent=5 // pred_fallthru
        _
      %p394 = scmp.le.s32.totalorder 1, %s29
      %p395 = scmp.lt.s32.totalorder %s29, 3
      %p396 = pnand %p394, %p395
      %p397 = pneg %p396
      // Predicated region
      $region49: #{tpu_custom_call.1} parent=5 // pred_check
        _
      $region50: #{tpu_custom_call.1} parent=5 // pred_check_branch
        %399 = sbr.rel (%p396) target = $region52
      $region51: #{tpu_custom_call.1} parent=5 // pred_region
        %s400 = ssub.s32 %s29, 1
        %s401 = sand.u32 %s56, 1
        %s402 = scalar_lea.sflag [#allocation3], %s401
        %s403 = sand.u32 %s56, 1
        %s404 = smul.addr %s403, 8
        %s405 = scalar_lea.vmem [#allocation2], %s404
        // Predicated region
        $region53: #{tpu_custom_call.1} parent=51 // pred_check
          %p406 = pneg %p69
        $region54: #{tpu_custom_call.1} parent=51 // pred_check_branch
          %408 = sbr.rel (%p406) target = $region56
        $region55: #{tpu_custom_call.1} parent=51 // pred_region
          %409 = dma.done %s402, 128
        $region56: #{tpu_custom_call.1} parent=51 // pred_fallthru
          _
        %s410 = sand.u32 %s34, 1
        %s411 = scalar_lea.sflag [#allocation6], %s410
        %s412 = sand.u32 %s82, 1
        %s413 = smul.addr %s412, 8
        %s414 = scalar_lea.vmem [#allocation5], %s413
        // Predicated region
        $region57: #{tpu_custom_call.1} parent=51 // pred_check
          %p415 = pneg %p95
        $region58: #{tpu_custom_call.1} parent=51 // pred_check_branch
          %417 = sbr.rel (%p415) target = $region60
        $region59: #{tpu_custom_call.1} parent=51 // pred_region
          %418 = dma.done %s411, 128
        $region60: #{tpu_custom_call.1} parent=51 // pred_fallthru
          _
        // Predicated region
        $region61: #{tpu_custom_call.1} parent=51 // pred_check
          %p419 = pneg %p147
        $region62: #{tpu_custom_call.1} parent=51 // pred_check_branch
          %421 = sbr.rel (%p419) target = $region64
        $region63: #{tpu_custom_call.1} parent=51 // pred_region
          %422 = dma.done [#allocation6], 128
        $region64: #{tpu_custom_call.1} parent=51 // pred_fallthru
          _
        // Predicated region
        $region65: #{tpu_custom_call.1} parent=51 // pred_check
          %p423 = pneg %p168
        $region66: #{tpu_custom_call.1} parent=51 // pred_check_branch
          %425 = sbr.rel (%p423) target = $region68
        $region67: #{tpu_custom_call.1} parent=51 // pred_region
          %426 = dma.done [#allocation9], 512
        $region68: #{tpu_custom_call.1} parent=51 // pred_fallthru
          _
        // Predicated region
        $region69: #{tpu_custom_call.1} parent=51 // pred_check
          %p427 = pneg %p210
        $region70: #{tpu_custom_call.1} parent=51 // pred_check_branch
          %429 = sbr.rel (%p427) target = $region72
        $region71: #{tpu_custom_call.1} parent=51 // pred_region
          %430 = dma.done [#allocation9], 512
        $region72: #{tpu_custom_call.1} parent=51 // pred_fallthru
          _
        %s431 = sand.u32 %s56, 1
        %s432 = scalar_lea.sflag [#allocation3], %s431
        %s433 = sand.u32 %s56, 1
        %s434 = smul.addr %s433, 8
        %s435 = scalar_lea.vmem [#allocation2], %s434
        %p436 = pneg %p69
        %p437 = pneg %p66
        %s438 = sand.u32 %s34, 1
        %s439 = scalar_lea.sflag [#allocation6], %s438
        %s440 = sand.u32 %s82, 1
        %s441 = smul.addr %s440, 8
        %s442 = scalar_lea.vmem [#allocation5], %s441
        %p443 = pneg %p95
        %p444 = pneg %p92
        %p445 = scmp.lt.s32.totalorder %s38, 1
        %s446 = scalar_select %p445, %s38, 1
        %s447 = scalar_lea.vmem %s2, %s446
        %p448 = pneg %p121
        %p449 = pneg %p118
        %p450 = pneg %p147
        %p451 = pneg %p144
        %p452 = pneg %p168
        %p453 = pneg %p165
        %p454 = pneg %p189
        %p455 = pneg %p186
        %p456 = pneg %p210
        %p457 = pneg %p207
        %p458 = pneg %p231
        %p459 = pneg %p228
        %p460 = pneg %p259
        %p461 = pneg %p256
        %s462 = sand.u32 %s246, 1
        %s463 = scalar_lea.sflag [#allocation4], %s462
        %s464 = sand.u32 %s246, 1
        %s465 = smul.addr %s464, 8
        %s466 = scalar_lea.vmem [#allocation11], %s465
        %p467 = pneg %p287
        %p468 = pneg %p284
        %s469 = sand.u32 %s274, 1
        %s470 = scalar_lea.sflag [#allocation13], %s469
        %s471 = sand.u32 %s274, 1
        %s472 = smul.addr %s471, 8
        %s473 = scalar_lea.vmem [#allocation12], %s472
        %p474 = scmp.lt.s32.totalorder %s38, 1
        %s475 = scalar_select %p474, %s38, 1
        %s476 = scalar_lea.vmem %s2, %s475
        %v477 = vld [vmem:[%s414] sm:$0xff]
        %v478 = vld [vmem:[%s405] sm:$0xff]
        %v479 = vld [vmem:[#allocation8] sm:$0xff]
        %v480 = vld [vmem:[#allocation8 + $0x8] sm:$0xff]
        %v481 = vld [vmem:[#allocation8 + $0x10] sm:$0xff]
        %v482 = vld [vmem:[#allocation8 + $0x18] sm:$0xff]
        %v483 = vld [vmem:[%s5] sm:$0x1]
        %v485 = vlaneseq
        %v486 = vshrl.u32 %v485, 7
        %v487 = vsub.s32 0, %v486
        %v488 = vrot.slane %v483, %v487
        %vm490 = vcmask 261120
        %v492 = vsel %vm490, %v478, 0
        %494 = vmatprep.subr.mxu0 0.0
        %495 = vmatpush1.msra.mxu0 0.0
        %496 = vmatprep.subr.mxu0 0.0
        %497 = vmatpush1.msra.mxu0 0.0
        %498 = vmatprep.subr.mxu0 0.0
        %499 = vmatpush1.msra.mxu0 0.0
        %500 = vmatprep.subr.mxu0 0.0
        %501 = vmatpush1.msra.mxu0 0.0
        %502 = vmatprep.subr.mxu0 0.0
        %503 = vmatpush1.msra.mxu0 0.0
        %504 = vmatprep.subr.mxu0 0.0
        %505 = vmatpush1.msra.mxu0 0.0
        %506 = vmatprep.subr.mxu0 0.0
        %507 = vmatpush1.msra.mxu0 0.0
        %508 = vmatprep.subr.mxu0 0.0
        %509 = vmatpush1.msra.mxu0 0.0
        %510 = vmatprep.subr.mxu0 0.0
        %511 = vmatpush1.msra.mxu0 0.0
        %512 = vmatprep.subr.mxu0 0.0
        %513 = vmatpush1.msra.mxu0 0.0
        %514 = vmatprep.subr.mxu0 0.0
        %515 = vmatpush1.msra.mxu0 0.0
        %516 = vmatprep.subr.mxu0 0.0
        %517 = vmatpush1.msra.mxu0 0.0
        %518 = vmatprep.subr.mxu0 0.0
        %519 = vmatpush1.msra.mxu0 %v482
        %520 = vmatprep.subr.mxu0 0.0
        %521 = vmatpush1.msra.mxu0 %v481
        %522 = vmatprep.subr.mxu0 0.0
        %523 = vmatpush1.msra.mxu0 %v480
        %524 = vmatprep.subr.mxu0 0.0
        %525 = vmatpush1.msra.mxu0 %v479
        %526 = vmatprep.subr.mxu0 0.0
        %527 = vmatpush2.msra.mxu0 0.0
        %528 = vmatprep.subr.mxu0 0.0
        %529 = vmatpush2.msra.mxu0 0.0
        %530 = vmatprep.subr.mxu0 0.0
        %531 = vmatpush2.msra.mxu0 0.0
        %532 = vmatprep.subr.mxu0 0.0
        %533 = vmatpush2.msra.mxu0 0.0
        %534 = vmatprep.subr.mxu0 0.0
        %535 = vmatpush2.msra.mxu0 0.0
        %536 = vmatprep.subr.mxu0 0.0
        %537 = vmatpush2.msra.mxu0 0.0
        %538 = vmatprep.subr.mxu0 0.0
        %539 = vmatpush2.msra.mxu0 0.0
        %540 = vmatprep.subr.mxu0 0.0
        %541 = vmatpush2.msra.mxu0 0.0
        %542 = vmatprep.subr.mxu0 0.0
        %543 = vmatpush2.msra.mxu0 0.0
        %544 = vmatprep.subr.mxu0 0.0
        %545 = vmatpush2.msra.mxu0 0.0
        %546 = vmatprep.subr.mxu0 0.0
        %547 = vmatpush2.msra.mxu0 0.0
        %548 = vmatprep.subr.mxu0 0.0
        %549 = vmatpush2.msra.mxu0 0.0
        %550 = vmatprep.subr.mxu0 0.0
        %551 = vmatpush2.msra.mxu0 0.0
        %552 = vmatprep.subr.mxu0 0.0
        %553 = vmatpush2.msra.mxu0 0.0
        %554 = vmatprep.subr.mxu0 0.0
        %555 = vmatpush2.msra.mxu0 0.0
        %556 = vmatprep.subr.mxu0 0.0
        %557 = vmatpush2.msra.mxu0 0.0
        %558 = vmatprep.mubr.f32.mxu0 0.0
        %559 = vmatmul.mubr.f32.gmra.mxu0 %v492
        %v560 = vpop.f32.mrf.mxu0
        %v561 = vadd.f32 %v488, %v560
        %v562 = vpop.f32.mrf.mxu0
        %563 = vdwg.mxu0
        %v564 = vxor.u32 %v561, 2147483648
        %v565 = vmul.f32 %v564, 1.442695
        %v566 = vpow.pop %v565
        %v567 = vadd.f32 %v566, 1.0
        %v568 = vrcp.pop %v567
        %v569 = vmul.f32 1.0, %v568
        %v570 = vld [vmem:[#allocation7] sm:$0xff]
        %v571 = vld [vmem:[%s476] sm:$0x1]
        %v573 = vlaneseq
        %v574 = vshrl.u32 %v573, 7
        %v575 = vsub.s32 0, %v574
        %v576 = vrot.slane %v571, %v575
        %vm578 = vcmask 64512
        %v580 = vsel %vm578, %v570, 0
        %582 = vmatprep.subr.mxu0 0.0
        %583 = vmatpush1.msra.mxu0 0.0
        %584 = vmatprep.subr.mxu0 0.0
        %585 = vmatpush1.msra.mxu0 0.0
        %586 = vmatprep.subr.mxu0 0.0
        %587 = vmatpush1.msra.mxu0 0.0
        %588 = vmatprep.subr.mxu0 0.0
        %589 = vmatpush1.msra.mxu0 0.0
        %590 = vmatprep.subr.mxu0 0.0
        %591 = vmatpush1.msra.mxu0 0.0
        %592 = vmatprep.subr.mxu0 0.0
        %593 = vmatpush1.msra.mxu0 0.0
        %594 = vmatprep.subr.mxu0 0.0
        %595 = vmatpush1.msra.mxu0 0.0
        %596 = vmatprep.subr.mxu0 0.0
        %597 = vmatpush1.msra.mxu0 0.0
        %598 = vmatprep.subr.mxu0 0.0
        %599 = vmatpush1.msra.mxu0 0.0
        %600 = vmatprep.subr.mxu0 0.0
        %601 = vmatpush1.msra.mxu0 0.0
        %602 = vmatprep.subr.mxu0 0.0
        %603 = vmatpush1.msra.mxu0 0.0
        %604 = vmatprep.subr.mxu0 0.0
        %605 = vmatpush1.msra.mxu0 0.0
        %606 = vmatprep.subr.mxu0 0.0
        %607 = vmatpush1.msra.mxu0 0.0
        %608 = vmatprep.subr.mxu0 0.0
        %609 = vmatpush1.msra.mxu0 0.0
        %610 = vmatprep.subr.mxu0 0.0
        %611 = vmatpush1.msra.mxu0 0.0
        %612 = vmatprep.subr.mxu0 0.0
        %613 = vmatpush1.msra.mxu0 %v477
        %614 = vmatprep.subr.mxu0 0.0
        %615 = vmatpush2.msra.mxu0 0.0
        %616 = vmatprep.subr.mxu0 0.0
        %617 = vmatpush2.msra.mxu0 0.0
        %618 = vmatprep.subr.mxu0 0.0
        %619 = vmatpush2.msra.mxu0 0.0
        %620 = vmatprep.subr.mxu0 0.0
        %621 = vmatpush2.msra.mxu0 0.0
        %622 = vmatprep.subr.mxu0 0.0
        %623 = vmatpush2.msra.mxu0 0.0
        %624 = vmatprep.subr.mxu0 0.0
        %625 = vmatpush2.msra.mxu0 0.0
        %626 = vmatprep.subr.mxu0 0.0
        %627 = vmatpush2.msra.mxu0 0.0
        %628 = vmatprep.subr.mxu0 0.0
        %629 = vmatpush2.msra.mxu0 0.0
        %630 = vmatprep.subr.mxu0 0.0
        %631 = vmatpush2.msra.mxu0 0.0
        %632 = vmatprep.subr.mxu0 0.0
        %633 = vmatpush2.msra.mxu0 0.0
        %634 = vmatprep.subr.mxu0 0.0
        %635 = vmatpush2.msra.mxu0 0.0
        %636 = vmatprep.subr.mxu0 0.0
        %637 = vmatpush2.msra.mxu0 0.0
        %638 = vmatprep.subr.mxu0 0.0
        %639 = vmatpush2.msra.mxu0 0.0
        %640 = vmatprep.subr.mxu0 0.0
        %641 = vmatpush2.msra.mxu0 0.0
        %642 = vmatprep.subr.mxu0 0.0
        %643 = vmatpush2.msra.mxu0 0.0
        %644 = vmatprep.subr.mxu0 0.0
        %645 = vmatpush2.msra.mxu0 0.0
        %646 = vmatprep.mubr.f32.mxu0 0.0
        %647 = vmatmul.mubr.f32.gmra.mxu0 %v580
        %v648 = vpop.f32.mrf.mxu0
        %v649 = vadd.f32 %v576, %v648
        %v650 = vpop.f32.mrf.mxu0
        %651 = vdwg.mxu0
        %v652 = vmul.f32 %v569, %v649
        %654 = vrot.lane.b32.xlu0 %v649, 96
        %v655 = vpop.permute.xlu0 %654
        %v657 = vrcp.pop %v655
        %v658 = vmul.f32 %v652, %v657
        %v659 = vld [vmem:[#allocation10] sm:$0xff]
        %v660 = vld [vmem:[#allocation10 + $0x8] sm:$0xff]
        %v661 = vld [vmem:[#allocation10 + $0x10] sm:$0xff]
        %v662 = vld [vmem:[#allocation10 + $0x18] sm:$0xff]
        %v663 = vld [vmem:[%s7] sm:$0x1]
        %v665 = vlaneseq
        %v666 = vshrl.u32 %v665, 7
        %v667 = vsub.s32 0, %v666
        %v668 = vrot.slane %v663, %v667
        %v671 = vsel %vm490, %v658, 0
        %673 = vmatprep.subr.mxu0 0.0
        %674 = vmatpush1.msra.mxu0 0.0
        %675 = vmatprep.subr.mxu0 0.0
        %676 = vmatpush1.msra.mxu0 0.0
        %677 = vmatprep.subr.mxu0 0.0
        %678 = vmatpush1.msra.mxu0 0.0
        %679 = vmatprep.subr.mxu0 0.0
        %680 = vmatpush1.msra.mxu0 0.0
        %681 = vmatprep.subr.mxu0 0.0
        %682 = vmatpush1.msra.mxu0 0.0
        %683 = vmatprep.subr.mxu0 0.0
        %684 = vmatpush1.msra.mxu0 0.0
        %685 = vmatprep.subr.mxu0 0.0
        %686 = vmatpush1.msra.mxu0 0.0
        %687 = vmatprep.subr.mxu0 0.0
        %688 = vmatpush1.msra.mxu0 0.0
        %689 = vmatprep.subr.mxu0 0.0
        %690 = vmatpush1.msra.mxu0 0.0
        %691 = vmatprep.subr.mxu0 0.0
        %692 = vmatpush1.msra.mxu0 0.0
        %693 = vmatprep.subr.mxu0 0.0
        %694 = vmatpush1.msra.mxu0 0.0
        %695 = vmatprep.subr.mxu0 0.0
        %696 = vmatpush1.msra.mxu0 0.0
        %697 = vmatprep.subr.mxu0 0.0
        %698 = vmatpush1.msra.mxu0 %v662
        %699 = vmatprep.subr.mxu0 0.0
        %700 = vmatpush1.msra.mxu0 %v661
        %701 = vmatprep.subr.mxu0 0.0
        %702 = vmatpush1.msra.mxu0 %v660
        %703 = vmatprep.subr.mxu0 0.0
        %704 = vmatpush1.msra.mxu0 %v659
        %705 = vmatprep.subr.mxu0 0.0
        %706 = vmatpush2.msra.mxu0 0.0
        %707 = vmatprep.subr.mxu0 0.0
        %708 = vmatpush2.msra.mxu0 0.0
        %709 = vmatprep.subr.mxu0 0.0
        %710 = vmatpush2.msra.mxu0 0.0
        %711 = vmatprep.subr.mxu0 0.0
        %712 = vmatpush2.msra.mxu0 0.0
        %713 = vmatprep.subr.mxu0 0.0
        %714 = vmatpush2.msra.mxu0 0.0
        %715 = vmatprep.subr.mxu0 0.0
        %716 = vmatpush2.msra.mxu0 0.0
        %717 = vmatprep.subr.mxu0 0.0
        %718 = vmatpush2.msra.mxu0 0.0
        %719 = vmatprep.subr.mxu0 0.0
        %720 = vmatpush2.msra.mxu0 0.0
        %721 = vmatprep.subr.mxu0 0.0
        %722 = vmatpush2.msra.mxu0 0.0
        %723 = vmatprep.subr.mxu0 0.0
        %724 = vmatpush2.msra.mxu0 0.0
        %725 = vmatprep.subr.mxu0 0.0
        %726 = vmatpush2.msra.mxu0 0.0
        %727 = vmatprep.subr.mxu0 0.0
        %728 = vmatpush2.msra.mxu0 0.0
        %729 = vmatprep.subr.mxu0 0.0
        %730 = vmatpush2.msra.mxu0 0.0
        %731 = vmatprep.subr.mxu0 0.0
        %732 = vmatpush2.msra.mxu0 0.0
        %733 = vmatprep.subr.mxu0 0.0
        %734 = vmatpush2.msra.mxu0 0.0
        %735 = vmatprep.subr.mxu0 0.0
        %736 = vmatpush2.msra.mxu0 0.0
        %737 = vmatprep.mubr.f32.mxu0 0.0
        %738 = vmatmul.mubr.f32.gmra.mxu0 %v671
        %v739 = vpop.f32.mrf.mxu0
        %v740 = vadd.f32 %v668, %v739
        %v741 = vpop.f32.mrf.mxu0
        %742 = vdwg.mxu0
        %743 = vst.msk [vmem:[%s466] sm:$0xff] %vm490, %v740
        %744 = vst.msk [vmem:[%s473] sm:$0xff] %vm490, %v652
        %s745 = sand.u32 %s246, 1
        %s746 = scalar_lea.sflag [#allocation4], %s745
        %s747 = sand.u32 %s246, 1
        %s748 = smul.addr %s747, 8
        %s749 = scalar_lea.vmem [#allocation11], %s748
        %s750 = sand.u32 %s274, 1
        %s751 = scalar_lea.sflag [#allocation13], %s750
        %s752 = sand.u32 %s274, 1
        %s753 = smul.addr %s752, 8
        %s754 = scalar_lea.vmem [#allocation12], %s753
        // Predicated region
        $region73: #{tpu_custom_call.1} parent=51 // pred_check
          %p755 = pneg %p256
        $region74: #{tpu_custom_call.1} parent=51 // pred_check_branch
          %757 = sbr.rel (%p755) target = $region76
        $region75: #{tpu_custom_call.1} parent=51 // pred_region
          %s759 = ssub.s32 128, 128
          %760 = vsyncadd %s746, %s759
          %s761 = sadd.s32 %s39, %s38
          %s762 = smul.addr %s761, 128
          %s763 = scalar_lea.hbm %s8, %s762
          %s765 = sshll.u32 %s749, 4
          %s766 = int_to_ptr.vmem [resolvable:$true] %s765
          %768 = dma.vmem_to_hbm [thread:$0]  %s766, 128, %s763, %s746
        $region76: #{tpu_custom_call.1} parent=51 // pred_fallthru
          _
        // Predicated region
        $region77: #{tpu_custom_call.1} parent=51 // pred_check
          %p769 = pneg %p284
        $region78: #{tpu_custom_call.1} parent=51 // pred_check_branch
          %771 = sbr.rel (%p769) target = $region80
        $region79: #{tpu_custom_call.1} parent=51 // pred_region
          %s773 = ssub.s32 128, 128
          %774 = vsyncadd %s751, %s773
          %s775 = sadd.s32 %s39, %s38
          %s776 = smul.addr %s775, 128
          %s777 = scalar_lea.hbm %s9, %s776
          %s779 = sshll.u32 %s754, 4
          %s780 = int_to_ptr.vmem [resolvable:$true] %s779
          %782 = dma.vmem_to_hbm [thread:$0]  %s780, 128, %s777, %s751
        $region80: #{tpu_custom_call.1} parent=51 // pred_fallthru
          _
      $region52: #{tpu_custom_call.1} parent=5 // pred_fallthru
        _
      %p783 = scmp.le.s32.totalorder 2, %s29
      // Predicated region
      $region81: #{tpu_custom_call.1} parent=5 // pred_check
        %p784 = pneg %p783
      $region82: #{tpu_custom_call.1} parent=5 // pred_check_branch
        %786 = sbr.rel (%p784) target = $region84
      $region83: #{tpu_custom_call.1} parent=5 // pred_region
        %s787 = ssub.s32 %s29, 2
        // Predicated region
        $region85: #{tpu_custom_call.1} parent=83 // pred_check
          %p788 = pneg %p262
        $region86: #{tpu_custom_call.1} parent=83 // pred_check_branch
          %790 = sbr.rel (%p788) target = $region88
        $region87: #{tpu_custom_call.1} parent=83 // pred_region
          %s791 = sand.u32 %s247, 1
          %s792 = scalar_lea.sflag [#allocation4], %s791
          %s793 = sand.u32 %s247, 1
          %s794 = smul.addr %s793, 8
          %s795 = scalar_lea.vmem [#allocation11], %s794
          %796 = dma.done %s792, 128
        $region88: #{tpu_custom_call.1} parent=83 // pred_fallthru
          _
        // Predicated region
        $region89: #{tpu_custom_call.1} parent=83 // pred_check
          %p797 = pneg %p290
        $region90: #{tpu_custom_call.1} parent=83 // pred_check_branch
          %799 = sbr.rel (%p797) target = $region92
        $region91: #{tpu_custom_call.1} parent=83 // pred_region
          %s800 = sand.u32 %s275, 1
          %s801 = scalar_lea.sflag [#allocation13], %s800
          %s802 = sand.u32 %s275, 1
          %s803 = smul.addr %s802, 8
          %s804 = scalar_lea.vmem [#allocation12], %s803
          %805 = dma.done %s801, 128
        $region92: #{tpu_custom_call.1} parent=83 // pred_fallthru
          _
      $region84: #{tpu_custom_call.1} parent=5 // pred_fallthru
        _
    $region6: #{tpu_custom_call.1} parent=1 // loop_footer
      %s33 = sadd.s32 1, %s29
    $region7: #{tpu_custom_call.1} parent=1 // loop_footer_branch
      %28 = sbr.rel target = $region3
    $region8: #{tpu_custom_call.1} parent=1 // loop_exit
      _
    %806 = vsyncpa [#allocation3], 1
    %s807 = scalar_lea.sflag [#allocation3], 1
    %808 = vsyncpa %s807, 1
    %809 = vsyncpa [#allocation6], 1
    %s810 = scalar_lea.sflag [#allocation6], 1
    %811 = vsyncpa %s810, 1
    %812 = vsyncpa [#allocation9], 1
    %813 = vsyncpa [#allocation4], 1
    %s814 = scalar_lea.sflag [#allocation4], 1
    %815 = vsyncpa %s814, 1
    %816 = vsyncpa [#allocation13], 1
    %s817 = scalar_lea.sflag [#allocation13], 1
    %818 = vsyncpa %s817, 1

</llo_original>
